<compile_context>
chip_gen: v5e
topology: v5e:2x2
jax: 0.10.0
libtpu: 0.0.40
codegen_flags: <defaults>
</compile_context>

<pallas_src>
import functools

import jax
import jax.numpy as jnp
from jax.experimental import pallas as pl
from jax.experimental.pallas import tpu as pltpu

_LANE = 128
_SUBLANE = 8


def _round_up(v, m):
    return ((v + m - 1) // m) * m


def _input_process_kernel(x_ref, w_ref, b_ref, o_ref, *, precision):
    # x_ref: (block_t, nfeats)    one batch's tile of frames (bs dim squeezed away)
    # w_ref: (nfeats, latent_p)   full weight (transposed vs. torch Linear), VMEM-resident
    # b_ref: (1, latent_p)        full bias, VMEM-resident
    # o_ref: (block_t, latent_p)  lane-dense slot (t_tile, b) of the (nframes, bs*latent_p) output
    y = jnp.dot(
        x_ref[...],
        w_ref[...],
        preferred_element_type=jnp.float32,
        precision=precision,
    )
    o_ref[...] = (y + b_ref[...].astype(jnp.float32)).astype(o_ref.dtype)


def prepare_input_process_params(weight, bias, *, compute_dtype=None):
    """Once-per-model parameter prep (hoisted out of the forward path).

    weight: torch-style (latent, nfeats); bias: (latent,).
    Returns (w_t, b2, latent): w_t is (nfeats, latent_p) with latent padded to a lane
    multiple, b2 is (1, latent_p) float32.
    """
    latent, nfeats = weight.shape
    assert bias.shape == (latent,)
    latent_p = _round_up(latent, _LANE)
    w_t = jnp.transpose(weight)  # (nfeats, latent)
    b = bias
    if latent_p != latent:
        w_t = jnp.pad(w_t, ((0, 0), (0, latent_p - latent)))
        b = jnp.pad(b, (0, latent_p - latent))
    if compute_dtype is not None:
        w_t = w_t.astype(compute_dtype)
    return w_t, b.reshape(1, latent_p).astype(jnp.float32), latent


def input_process_apply(x, w_t, b2, latent, *, block_t=None, compute_dtype=None):
    """x: (bs, nframes, nfeats) -> (nframes, bs, latent), i.e. permute(1,0,2) + Linear."""
    bs, nframes, nfeats = x.shape
    assert w_t.shape[0] == nfeats
    latent_p = w_t.shape[1]
    out_dtype = x.dtype

    if compute_dtype is not None:
        x = x.astype(compute_dtype)

    # Tile over frames.  Cap the tile so double-buffered in+out tiles stay far under the
    # smallest default scoped-VMEM budget across generations (16 MiB on v5e).
    row_bytes = 2 * (nfeats * x.dtype.itemsize + latent_p * jnp.dtype(out_dtype).itemsize)
    vmem_cap_rows = max(
        _SUBLANE, ((8 << 20) // max(row_bytes, 1)) // _SUBLANE * _SUBLANE
    )
    if block_t is None:
        block_t = 1024  # sweep 512-2048; keeps the DMA/compute pipeline 2-deep
    block_t = min(_round_up(nframes, _SUBLANE), _round_up(block_t, _SUBLANE), vmem_cap_rows)
    t_tiles = pl.cdiv(nframes, block_t)  # ragged last tile is masked by Pallas

    precision = (
        jax.lax.Precision.HIGHEST if x.dtype == jnp.float32 else jax.lax.Precision.DEFAULT
    )
    kernel = functools.partial(_input_process_kernel, precision=precision)

    cost = pl.CostEstimate(
        flops=2 * bs * nframes * nfeats * latent_p,
        transcendentals=0,
        bytes_accessed=(
            x.size * x.dtype.itemsize
            + w_t.size * w_t.dtype.itemsize
            + b2.size * b2.dtype.itemsize
            + nframes * bs * latent_p * jnp.dtype(out_dtype).itemsize
        ),
    )

    y2d = pl.pallas_call(
        kernel,
        out_shape=jax.ShapeDtypeStruct((nframes, bs * latent_p), out_dtype),
        grid_spec=pl.GridSpec(
            grid=(t_tiles, bs),
            in_specs=[
                # (b, t-tile, :) slab of x; the bs dim is squeezed away inside the kernel.
                pl.BlockSpec((pl.Squeezed(), block_t, nfeats), lambda t, b: (b, t, 0)),
                pl.BlockSpec((nfeats, latent_p), lambda t, b: (0, 0)),  # VMEM-resident
                pl.BlockSpec((1, latent_p), lambda t, b: (0, 0)),       # VMEM-resident
            ],
            # Fused (b,t)->(t,b) permute: output laid out as (nframes, bs*latent_p) so the
            # final reshape to (nframes, bs, latent_p) is free (no HBM roundtrip).
            out_specs=pl.BlockSpec((block_t, latent_p), lambda t, b: (t, b)),
        ),
        compiler_params=pltpu.CompilerParams(
            dimension_semantics=("parallel", "parallel"),
        ),
        cost_estimate=cost,
    )(x, w_t, b2)

    y = y2d.reshape(nframes, bs, latent_p)
    if latent_p != latent:
        y = y[:, :, :latent]
    return y


def input_process(x, weight, bias, *, block_t=None, compute_dtype=None):
    """Convenience wrapper taking torch-style params.  For hot loops, call
    prepare_input_process_params() once and reuse input_process_apply()."""
    w_t, b2, latent = prepare_input_process_params(weight, bias, compute_dtype=compute_dtype)
    return input_process_apply(x, w_t, b2, latent, block_t=block_t, compute_dtype=compute_dtype)


if __name__ == "__main__":
    # Small shapes consistent with the module: bs=2, nframes=16, input_feats=48, latent_dim=64
    bs, nframes, input_feats, latent_dim = 2, 16, 48, 64

    key = jax.random.PRNGKey(0)
    kx, kw, kb = jax.random.split(key, 3)

    x = jax.random.normal(kx, (bs, nframes, input_feats), dtype=jnp.float32)
    # Torch nn.Linear parameter shapes: W (out, in), b (out,)
    weight = jax.random.normal(kw, (latent_dim, input_feats), dtype=jnp.float32) * 0.02
    bias = jax.random.normal(kb, (latent_dim,), dtype=jnp.float32) * 0.01

    # Parameter prep hoisted out of the per-call path (done once per model).
    w_t, b2, latent = prepare_input_process_params(weight, bias)

    out = input_process_apply(x, w_t, b2, latent)
    out = jax.block_until_ready(out)

    # Reference (plain JAX) for permute(1,0,2) + Linear, at matching precision.
    ref = (
        jnp.einsum("btf,lf->tbl", x, weight, precision=jax.lax.Precision.HIGHEST)
        + bias[None, None, :]
    )
    assert out.shape == (nframes, bs, latent_dim)
    assert jnp.allclose(out, ref, atol=1e-4, rtol=1e-4), float(jnp.max(jnp.abs(out - ref)))

    print("KERNEL_OK")
</pallas_src>

<mosaic_0001>
module attributes {stable_mosaic.version = 11 : i64} {
  func.func @_input_process_kernel(%arg0: i32, %arg1: i32, %arg2: memref<1x16x48xf32, #tpu.memory_space<vmem>>, %arg3: memref<48x128xf32, #tpu.memory_space<vmem>>, %arg4: memref<1x128xf32, #tpu.memory_space<vmem>>, %arg5: memref<16x128xf32, #tpu.memory_space<vmem>>) attributes {dimension_semantics = [#tpu.dimension_semantics<parallel>, #tpu.dimension_semantics<parallel>], iteration_bounds = array<i64: 1, 2>, scalar_prefetch = 0 : i64, scratch_operands = 0 : i64, tpu.core_type = #tpu.core_type<tc>, window_params = [{transform_indices = @transform_0, window_bounds = array<i64: 1, 16, 48>}, {pipeline_mode = #tpu.pipeline_mode<synchronous>, transform_indices = @transform_1, window_bounds = array<i64: 48, 128>}, {pipeline_mode = #tpu.pipeline_mode<synchronous>, transform_indices = @transform_2, window_bounds = array<i64: 1, 128>}, {transform_indices = @transform_3, window_bounds = array<i64: 16, 128>}]} {
    %c0 = arith.constant 0 : index
    %c0_0 = arith.constant 0 : index
    %c0_1 = arith.constant 0 : index
    %0 = vector.load %arg2[%c0, %c0_0, %c0_1] : memref<1x16x48xf32, #tpu.memory_space<vmem>>, vector<1x16x48xf32>
    %1 = vector.shape_cast %0 : vector<1x16x48xf32> to vector<16x48xf32>
    %c0_2 = arith.constant 0 : index
    %c0_3 = arith.constant 0 : index
    %2 = vector.load %arg3[%c0_2, %c0_3] : memref<48x128xf32, #tpu.memory_space<vmem>>, vector<48x128xf32>
    %cst = arith.constant dense<0.000000e+00> : vector<16x128xf32>
    %3 = tpu.matmul %1, %2, %cst {dimension_numbers = #tpu.dot_dimension_numbers<[1], [0], [0], [1], [0, 0, 1, 1], [], []>, precision = #tpu.contract_precision<fp32>} : vector<16x48xf32>, vector<48x128xf32>, vector<16x128xf32> -> vector<16x128xf32>
    %c0_4 = arith.constant 0 : index
    %c0_5 = arith.constant 0 : index
    %4 = vector.load %arg4[%c0_4, %c0_5] : memref<1x128xf32, #tpu.memory_space<vmem>>, vector<1x128xf32>
    %5 = vector.broadcast %4 : vector<1x128xf32> to vector<16x128xf32>
    %6 = arith.addf %3, %5 : vector<16x128xf32>
    %c0_6 = arith.constant 0 : index
    %c0_7 = arith.constant 0 : index
    %7 = vector.load %arg5[%c0_6, %c0_7] : memref<16x128xf32, #tpu.memory_space<vmem>>, vector<16x128xf32>
    tpu.vector_store %arg5[%c0_6, %c0_7], %6 {strides = array<i32>} : memref<16x128xf32, #tpu.memory_space<vmem>>, vector<16x128xf32>,
    return
  }
  func.func @transform_0(%arg0: i32, %arg1: i32) -> (i32, i32, i32) {
    %c0_i32 = arith.constant 0 : i32
    %c0_i32_0 = arith.constant 0 : i32
    return %arg1, %arg0, %c0_i32 : i32, i32, i32
  }
  func.func @transform_1(%arg0: i32, %arg1: i32) -> (i32, i32) {
    %c0_i32 = arith.constant 0 : i32
    %c0_i32_0 = arith.constant 0 : i32
    %c0_i32_1 = arith.constant 0 : i32
    return %c0_i32, %c0_i32_0 : i32, i32
  }
  func.func @transform_2(%arg0: i32, %arg1: i32) -> (i32, i32) {
    %c0_i32 = arith.constant 0 : i32
    %c0_i32_0 = arith.constant 0 : i32
    %c0_i32_1 = arith.constant 0 : i32
    return %c0_i32, %c0_i32_0 : i32, i32
  }
  func.func @transform_3(%arg0: i32, %arg1: i32) -> (i32, i32) {
    %c0_i32 = arith.constant 0 : i32
    return %arg0, %arg1 : i32, i32
  }
}

</mosaic_0001>

<llo_original>
// kernel: tpu_custom_call.1
$region0: #{tpu_custom_call.1}
  #allocation0 [shape = 'u32[]', space=smem, size = 0x4, offset = 0x4, fixed_abs, tag = 'smem constant byte address 0x4 - core index']
  #allocation1 [shape = 'u32[72,128]{1,0:T(1,128)}', space=vmem, size = 0x9000, scoped, tag = 'internal scratch']
  %s0 = inlined_call_operand.hbm [shape: f32[2,16,48], index: 0, kind: input, shape index: {}]
  %s1 = inlined_call_operand.hbm [shape: f32[48,128], index: 1, kind: input, shape index: {}]
  %s2 = inlined_call_operand.vmem [shape: f32[1,128], index: 2, kind: input, shape index: {}]
  %s3 = inlined_call_operand.hbm [shape: f32[16,256], index: 3, kind: output, shape index: {}]
  %s4 = sld [smem:[#allocation0]]
  $region53: #{tpu_custom_call.1} parent=0
    _
  %s6 = ssub.s32 1, %s4
  %s7 = scalar_select 0, %s6, %s4
  $region1: #{tpu_custom_call.1} parent=0
    #allocation2 [shape = 'u8[16384]{0}', space=vmem, size = 0x4000, scoped, tag = 'input window, operand 0']
    #allocation3 [shape = 's32[2]{0}', space=sflag, size = 0x8, scoped, tag = 'scoped memory for tpu_custom_call.1']
    #allocation4 [shape = 's32[2]{0}', space=sflag, size = 0x8, scoped, tag = 'scoped memory for tpu_custom_call.1']
    #allocation5 [shape = 'u8[24576]{0}', space=vmem, size = 0x6000, scoped, tag = 'input window, operand 1, single buffered']
    #allocation6 [shape = 's32[1]{0}', space=sflag, size = 0x4, scoped, tag = 'scoped memory for tpu_custom_call.1']
    #allocation7 [shape = 'u8[16384]{0}', space=vmem, size = 0x4000, scoped, tag = 'output window, operand 0']
    %8 = vsyncpa [#allocation3], 0
    %s9 = scalar_lea.sflag [#allocation3], 1
    %10 = vsyncpa %s9, 0
    %11 = vsyncpa [#allocation6], 0
    %12 = vsyncpa [#allocation4], 0
    %s13 = scalar_lea.sflag [#allocation4], 1
    %14 = vsyncpa %s13, 0
    loop: start=0, step=1, limit=4
    $region2: #{tpu_custom_call.1} parent=1 // loop_pre_header
      _
    $region3: #{tpu_custom_call.1} parent=1 // loop_header
      %s16 = sphi 0, %s20
      %p17 = scmp.ge.s32.totalorder %s16, 4
      %s23 = sphi 0, %s35
      %s24 = sphi 0, %s31
      %s25 = sphi 0, %s23
      %s26 = sphi 0, %s24
      %s27 = sphi 0, %s25
      %s28 = sphi 0, %s26
      %s40 = sphi 0, %s42
      %s43 = sphi 0, %s40
      %s44 = sphi 0, %s43
      %s60 = sphi 0, %s44
      %s64 = sphi 0, %s64
      %s66 = sphi 0, %s64
      %s67 = sphi 0, %s66
      %s81 = sphi 0, %s67
      %s85 = sphi 0, %s85
      %s87 = sphi 0, %s85
      %s88 = sphi 0, %s87
      %s102 = sphi 0, %s88
      %s110 = sphi 0, %s112
      %s113 = sphi 0, %s110
      %s114 = sphi 0, %s113
      %s130 = sphi 0, %s114
    $region4: #{tpu_custom_call.1} parent=1 // loop_header_branch
      %19 = sbr.rel (%p17) target = $region8
    $region5: #{tpu_custom_call.1} parent=1 // loop_body
      %s21 = ssub.s32 %s16, 1
      %s22 = ssub.s32 %s16, 2
      %s29 = sadd.s32 1, %s24
      %p30 = scmp.ge.s32.totalorder %s29, 2
      %s31 = scalar_select %p30, 0, %s29
      %s32 = sadd.s32 1, %s23
      %s33 = scalar_select %p30, %s32, %s23
      %p34 = scmp.ge.s32.totalorder %s33, 1
      %s35 = scalar_select %p34, 0, %s33
      %s36 = ssub.s32 %s24, %s31
      %s37 = ssub.s32 %s23, %s35
      %s38 = sor.u32 %s36, %s37
      %p39 = scmp.eq.s32.totalorder %s38, 0
      %s41 = sadd.s32 %s40, 1
      %s42 = scalar_select %p39, %s40, %s41
      %p45 = pneg %p39
      %p46 = scmp.eq.s32.totalorder %s16, 1
      %p47 = por %p45, %p46
      %p48 = scmp.ne.s32.totalorder %s40, %s43
      %p49 = scmp.eq.s32.totalorder %s16, 0
      %p50 = por %p48, %p49
      %p51 = scmp.ne.s32.totalorder %s40, %s43
      %p52 = scmp.eq.s32.totalorder %s21, 1
      %p53 = por %p51, %p52
      %p54 = scmp.ne.s32.totalorder %s43, %s44
      %p55 = scmp.eq.s32.totalorder %s21, 0
      %p56 = por %p54, %p55
      %p57 = scmp.ne.s32.totalorder %s43, %s44
      %p58 = scmp.eq.s32.totalorder %s22, 1
      %p59 = por %p57, %p58
      %p61 = scmp.ne.s32.totalorder %s44, %s60
      %p62 = scmp.eq.s32.totalorder %s22, 0
      %p63 = por %p61, %p62
      %s65 = sadd.s32 %s64, 1
      %p68 = scmp.eq.s32.totalorder %s16, 1
      %p69 = scmp.ne.s32.totalorder %s64, %s66
      %p70 = scmp.eq.s32.totalorder %s16, 0
      %p71 = por %p69, %p70
      %p72 = scmp.ne.s32.totalorder %s64, %s66
      %p73 = scmp.eq.s32.totalorder %s21, 1
      %p74 = por %p72, %p73
      %p75 = scmp.ne.s32.totalorder %s66, %s67
      %p76 = scmp.eq.s32.totalorder %s21, 0
      %p77 = por %p75, %p76
      %p78 = scmp.ne.s32.totalorder %s66, %s67
      %p79 = scmp.eq.s32.totalorder %s22, 1
      %p80 = por %p78, %p79
      %p82 = scmp.ne.s32.totalorder %s67, %s81
      %p83 = scmp.eq.s32.totalorder %s22, 0
      %p84 = por %p82, %p83
      %s86 = sadd.s32 %s85, 1
      %p89 = scmp.eq.s32.totalorder %s16, 1
      %p90 = scmp.ne.s32.totalorder %s85, %s87
      %p91 = scmp.eq.s32.totalorder %s16, 0
      %p92 = por %p90, %p91
      %p93 = scmp.ne.s32.totalorder %s85, %s87
      %p94 = scmp.eq.s32.totalorder %s21, 1
      %p95 = por %p93, %p94
      %p96 = scmp.ne.s32.totalorder %s87, %s88
      %p97 = scmp.eq.s32.totalorder %s21, 0
      %p98 = por %p96, %p97
      %p99 = scmp.ne.s32.totalorder %s87, %s88
      %p100 = scmp.eq.s32.totalorder %s22, 1
      %p101 = por %p99, %p100
      %p103 = scmp.ne.s32.totalorder %s88, %s102
      %p104 = scmp.eq.s32.totalorder %s22, 0
      %p105 = por %p103, %p104
      %s106 = ssub.s32 %s23, %s35
      %s107 = ssub.s32 %s24, %s31
      %s108 = sor.u32 %s106, %s107
      %p109 = scmp.eq.s32.totalorder %s108, 0
      %s111 = sadd.s32 %s110, 1
      %s112 = scalar_select %p109, %s110, %s111
      %p115 = pneg %p109
      %p116 = scmp.eq.s32.totalorder %s16, 1
      %p117 = por %p115, %p116
      %p118 = scmp.ne.s32.totalorder %s110, %s113
      %p119 = scmp.eq.s32.totalorder %s16, 0
      %p120 = por %p118, %p119
      %p121 = scmp.ne.s32.totalorder %s110, %s113
      %p122 = scmp.eq.s32.totalorder %s21, 1
      %p123 = por %p121, %p122
      %p124 = scmp.ne.s32.totalorder %s113, %s114
      %p125 = scmp.eq.s32.totalorder %s21, 0
      %p126 = por %p124, %p125
      %p127 = scmp.ne.s32.totalorder %s113, %s114
      %p128 = scmp.eq.s32.totalorder %s22, 1
      %p129 = por %p127, %p128
      %p131 = scmp.ne.s32.totalorder %s114, %s130
      %p132 = scmp.eq.s32.totalorder %s22, 0
      %p133 = por %p131, %p132
      %p134 = scmp.le.s32.totalorder 1, %s16
      %p135 = scmp.lt.s32.totalorder %s16, 3
      %p136 = pnand %p134, %p135
      %p137 = pneg %p136
      // Predicated region
      $region9: #{tpu_custom_call.1} parent=5 // pred_check
        _
      $region10: #{tpu_custom_call.1} parent=5 // pred_check_branch
        %139 = sbr.rel (%p136) target = $region12
      $region11: #{tpu_custom_call.1} parent=5 // pred_region
        %s140 = ssub.s32 %s16, 1
        // Predicated region
        $region13: #{tpu_custom_call.1} parent=11 // pred_check
          %p141 = pneg %p77
        $region14: #{tpu_custom_call.1} parent=11 // pred_check_branch
          %143 = sbr.rel (%p141) target = $region16
        $region15: #{tpu_custom_call.1} parent=11 // pred_region
          %145 = vsyncadd [#allocation6], 0
          %s146 = sshll.u32 %s1, 4
          %s147 = int_to_ptr.hbm [resolvable:$true] %s146
          %s148 = sshll.u32 [#allocation5], 4
          %s149 = int_to_ptr.vmem [resolvable:$true] %s148
          %154 = dma.hbm_to_vmem [thread:$0]  %s147, 768, %s149, [#allocation6], 128, 128, 8
        $region16: #{tpu_custom_call.1} parent=11 // pred_fallthru
          _
        // Predicated region
        $region17: #{tpu_custom_call.1} parent=11 // pred_check
          %p155 = pneg %p98
        $region18: #{tpu_custom_call.1} parent=11 // pred_check_branch
          %157 = sbr.rel (%p155) target = $region20
        $region19: #{tpu_custom_call.1} parent=11 // pred_region
          _
        $region20: #{tpu_custom_call.1} parent=11 // pred_fallthru
          _
      $region12: #{tpu_custom_call.1} parent=5 // pred_fallthru
        _
      %p158 = scmp.lt.s32.totalorder %s16, 2
      // Predicated region
      $region21: #{tpu_custom_call.1} parent=5 // pred_check
        %p159 = pneg %p158
      $region22: #{tpu_custom_call.1} parent=5 // pred_check_branch
        %161 = sbr.rel (%p159) target = $region24
      $region23: #{tpu_custom_call.1} parent=5 // pred_region
        // Predicated region
        $region25: #{tpu_custom_call.1} parent=23 // pred_check
          %p162 = pneg %p50
        $region26: #{tpu_custom_call.1} parent=23 // pred_check_branch
          %164 = sbr.rel (%p162) target = $region28
        $region27: #{tpu_custom_call.1} parent=23 // pred_region
          %s165 = sand.u32 %s40, 1
          %s166 = scalar_lea.sflag [#allocation3], %s165
          %s167 = sand.u32 %s40, 1
          %s168 = smul.addr %s167, 16
          %s169 = scalar_lea.vmem [#allocation2], %s168
          %s170 = smul.u32 2, %s23
          %172 = vsyncadd %s166, 0
          %s173 = smul.addr %s24, 2
          %s174 = sadd.s32 %s170, %s173
          %s175 = smul.addr %s174, 8
          %s176 = scalar_lea.hbm %s0, %s175
          %s177 = sshll.u32 %s176, 4
          %s178 = int_to_ptr.hbm [resolvable:$true] %s177
          %s179 = sshll.u32 %s169, 4
          %s180 = int_to_ptr.vmem [resolvable:$true] %s179
          %185 = dma.hbm_to_vmem [thread:$0]  %s178, 256, %s180, %s166, 128, 128, 8
        $region28: #{tpu_custom_call.1} parent=23 // pred_fallthru
          _
      $region24: #{tpu_custom_call.1} parent=5 // pred_fallthru
        _
      %p186 = scmp.le.s32.totalorder 1, %s16
      %p187 = scmp.lt.s32.totalorder %s16, 3
      %p188 = pnand %p186, %p187
      %p189 = pneg %p188
      // Predicated region
      $region29: #{tpu_custom_call.1} parent=5 // pred_check
        _
      $region30: #{tpu_custom_call.1} parent=5 // pred_check_branch
        %191 = sbr.rel (%p188) target = $region32
      $region31: #{tpu_custom_call.1} parent=5 // pred_region
        %s192 = ssub.s32 %s16, 1
        %s193 = sand.u32 %s43, 1
        %s194 = scalar_lea.sflag [#allocation3], %s193
        %s195 = sand.u32 %s43, 1
        %s196 = smul.addr %s195, 16
        %s197 = scalar_lea.vmem [#allocation2], %s196
        // Predicated region
        $region33: #{tpu_custom_call.1} parent=31 // pred_check
          %p198 = pneg %p56
        $region34: #{tpu_custom_call.1} parent=31 // pred_check_branch
          %200 = sbr.rel (%p198) target = $region36
        $region35: #{tpu_custom_call.1} parent=31 // pred_region
          %202 = dma.done %s194, 256
        $region36: #{tpu_custom_call.1} parent=31 // pred_fallthru
          _
        // Predicated region
        $region37: #{tpu_custom_call.1} parent=31 // pred_check
          %p203 = pneg %p77
        $region38: #{tpu_custom_call.1} parent=31 // pred_check_branch
          %205 = sbr.rel (%p203) target = $region40
        $region39: #{tpu_custom_call.1} parent=31 // pred_region
          %207 = dma.done [#allocation6], 768
        $region40: #{tpu_custom_call.1} parent=31 // pred_fallthru
          _
        %s208 = sand.u32 %s43, 1
        %s209 = scalar_lea.sflag [#allocation3], %s208
        %s210 = sand.u32 %s43, 1
        %s211 = smul.addr %s210, 16
        %s212 = scalar_lea.vmem [#allocation2], %s211
        %p213 = pneg %p56
        %p214 = pneg %p53
        %p215 = pneg %p77
        %p216 = pneg %p74
        %p217 = pneg %p98
        %p218 = pneg %p95
        %p219 = pneg %p126
        %p220 = pneg %p123
        %s221 = sand.u32 %s113, 1
        %s222 = scalar_lea.sflag [#allocation4], %s221
        %s223 = sand.u32 %s113, 1
        %s224 = smul.addr %s223, 16
        %s225 = scalar_lea.vmem [#allocation7], %s224
        %s226 = smul.u32 2, %s25
        %s227 = smul.u32 2, %s25
        %v228 = vld [vmem:[%s197] sm:$0xff]
        %v229 = vld [vmem:[%s197 + $0x8] sm:$0xff]
        %v230 = vld [vmem:[#allocation5] sm:$0xff]
        %v231 = vld [vmem:[#allocation5 + $0x8] sm:$0xff]
        %v232 = vld [vmem:[#allocation5 + $0x10] sm:$0xff]
        %v233 = vld [vmem:[#allocation5 + $0x18] sm:$0xff]
        %v234 = vld [vmem:[#allocation5 + $0x20] sm:$0xff]
        %v235 = vld [vmem:[#allocation5 + $0x28] sm:$0xff]
        %v236 = vld [vmem:[%s2] sm:$0x1]
        %v238 = vperm.slane %v236, 0
        %vm240 = vcmask 392192
        %v242 = vsel %vm240, %v228, 0
        %v245 = vsel %vm240, %v229, 0
        %247 = vmatpush.msra.mxu0 0.0
        %248 = vmatpush.msra.mxu0 0.0
        %249 = vmatpush.msra.mxu0 0.0
        %250 = vmatpush.msra.mxu0 0.0
        %251 = vmatpush.msra.mxu0 0.0
        %252 = vmatpush.msra.mxu0 0.0
        %253 = vmatpush.msra.mxu0 0.0
        %254 = vmatpush.msra.mxu0 0.0
        %255 = vmatpush.msra.mxu0 0.0
        %256 = vmatpush.msra.mxu0 0.0
        %v257 = vand.u32 %v235, 4294901760
        %258 = vmatpush.msra.mxu0 %v257
        %v259 = vand.u32 %v234, 4294901760
        %260 = vmatpush.msra.mxu0 %v259
        %v261 = vand.u32 %v233, 4294901760
        %262 = vmatpush.msra.mxu0 %v261
        %v263 = vand.u32 %v232, 4294901760
        %264 = vmatpush.msra.mxu0 %v263
        %v265 = vand.u32 %v231, 4294901760
        %266 = vmatpush.msra.mxu0 %v265
        %v267 = vand.u32 %v230, 4294901760
        %268 = vmatpush.msra.mxu0 %v267
        %v269 = vand.u32 %v242, 4294901760
        %v270 = vsub.f32 %v242, %v269
        %v271 = vand.u32 %v270, 4294901760
        %v272 = vsub.f32 %v270, %v271
        %v273 = vand.u32 %v272, 4294901760
        %274 = vmatmul.f32.gmra.mxu0 %v273
        %v275 = vpop.f32.mrf.mxu0
        %v276 = vadd.f32 %v238, %v275
        %v277 = vand.u32 %v245, 4294901760
        %v278 = vsub.f32 %v245, %v277
        %v279 = vand.u32 %v278, 4294901760
        %v280 = vsub.f32 %v278, %v279
        %v281 = vand.u32 %v280, 4294901760
        %282 = vmatmul.f32.gmra.mxu0 %v281
        %v283 = vpop.f32.mrf.mxu0
        %v284 = vadd.f32 %v238, %v283
        %285 = vdwg.mxu0
        %286 = vmatpush.msra.mxu0 0.0
        %287 = vmatpush.msra.mxu0 0.0
        %288 = vmatpush.msra.mxu0 0.0
        %289 = vmatpush.msra.mxu0 0.0
        %290 = vmatpush.msra.mxu0 0.0
        %291 = vmatpush.msra.mxu0 0.0
        %292 = vmatpush.msra.mxu0 0.0
        %293 = vmatpush.msra.mxu0 0.0
        %294 = vmatpush.msra.mxu0 0.0
        %295 = vmatpush.msra.mxu0 0.0
        %v296 = vand.u32 %v235, 4294901760
        %v297 = vsub.f32 %v235, %v296
        %v298 = vand.u32 %v297, 4294901760
        %v299 = vsub.f32 %v297, %v298
        %v300 = vand.u32 %v299, 4294901760
        %301 = vmatpush.msra.mxu0 %v300
        %v302 = vand.u32 %v234, 4294901760
        %v303 = vsub.f32 %v234, %v302
        %v304 = vand.u32 %v303, 4294901760
        %v305 = vsub.f32 %v303, %v304
        %v306 = vand.u32 %v305, 4294901760
        %307 = vmatpush.msra.mxu0 %v306
        %v308 = vand.u32 %v233, 4294901760
        %v309 = vsub.f32 %v233, %v308
        %v310 = vand.u32 %v309, 4294901760
        %v311 = vsub.f32 %v309, %v310
        %v312 = vand.u32 %v311, 4294901760
        %313 = vmatpush.msra.mxu0 %v312
        %v314 = vand.u32 %v232, 4294901760
        %v315 = vsub.f32 %v232, %v314
        %v316 = vand.u32 %v315, 4294901760
        %v317 = vsub.f32 %v315, %v316
        %v318 = vand.u32 %v317, 4294901760
        %319 = vmatpush.msra.mxu0 %v318
        %v320 = vand.u32 %v231, 4294901760
        %v321 = vsub.f32 %v231, %v320
        %v322 = vand.u32 %v321, 4294901760
        %v323 = vsub.f32 %v321, %v322
        %v324 = vand.u32 %v323, 4294901760
        %325 = vmatpush.msra.mxu0 %v324
        %v326 = vand.u32 %v230, 4294901760
        %v327 = vsub.f32 %v230, %v326
        %v328 = vand.u32 %v327, 4294901760
        %v329 = vsub.f32 %v327, %v328
        %v330 = vand.u32 %v329, 4294901760
        %331 = vmatpush.msra.mxu0 %v330
        %v332 = vand.u32 %v242, 4294901760
        %333 = vmatmul.f32.gmra.mxu0 %v332
        %v334 = vpop.f32.mrf.mxu0
        %v335 = vadd.f32 %v276, %v334
        %v336 = vand.u32 %v245, 4294901760
        %337 = vmatmul.f32.gmra.mxu0 %v336
        %v338 = vpop.f32.mrf.mxu0
        %v339 = vadd.f32 %v284, %v338
        %340 = vdwg.mxu0
        %341 = vmatpush.msra.mxu0 0.0
        %342 = vmatpush.msra.mxu0 0.0
        %343 = vmatpush.msra.mxu0 0.0
        %344 = vmatpush.msra.mxu0 0.0
        %345 = vmatpush.msra.mxu0 0.0
        %346 = vmatpush.msra.mxu0 0.0
        %347 = vmatpush.msra.mxu0 0.0
        %348 = vmatpush.msra.mxu0 0.0
        %349 = vmatpush.msra.mxu0 0.0
        %350 = vmatpush.msra.mxu0 0.0
        %v351 = vand.u32 %v235, 4294901760
        %v352 = vsub.f32 %v235, %v351
        %353 = vmatpush.msra.mxu0 %v352
        %v354 = vand.u32 %v234, 4294901760
        %v355 = vsub.f32 %v234, %v354
        %356 = vmatpush.msra.mxu0 %v355
        %v357 = vand.u32 %v233, 4294901760
        %v358 = vsub.f32 %v233, %v357
        %359 = vmatpush.msra.mxu0 %v358
        %v360 = vand.u32 %v232, 4294901760
        %v361 = vsub.f32 %v232, %v360
        %362 = vmatpush.msra.mxu0 %v361
        %v363 = vand.u32 %v231, 4294901760
        %v364 = vsub.f32 %v231, %v363
        %365 = vmatpush.msra.mxu0 %v364
        %v366 = vand.u32 %v230, 4294901760
        %v367 = vsub.f32 %v230, %v366
        %368 = vmatpush.msra.mxu0 %v367
        %v369 = vand.u32 %v242, 4294901760
        %v370 = vsub.f32 %v242, %v369
        %371 = vmatmul.f32.gmra.mxu0 %v370
        %v372 = vpop.f32.mrf.mxu0
        %v373 = vadd.f32 %v335, %v372
        %v374 = vand.u32 %v245, 4294901760
        %v375 = vsub.f32 %v245, %v374
        %376 = vmatmul.f32.gmra.mxu0 %v375
        %v377 = vpop.f32.mrf.mxu0
        %v378 = vadd.f32 %v339, %v377
        %379 = vdwg.mxu0
        %380 = vmatpush.msra.mxu0 0.0
        %381 = vmatpush.msra.mxu0 0.0
        %382 = vmatpush.msra.mxu0 0.0
        %383 = vmatpush.msra.mxu0 0.0
        %384 = vmatpush.msra.mxu0 0.0
        %385 = vmatpush.msra.mxu0 0.0
        %386 = vmatpush.msra.mxu0 0.0
        %387 = vmatpush.msra.mxu0 0.0
        %388 = vmatpush.msra.mxu0 0.0
        %389 = vmatpush.msra.mxu0 0.0
        %v390 = vand.u32 %v235, 4294901760
        %391 = vmatpush.msra.mxu0 %v390
        %v392 = vand.u32 %v234, 4294901760
        %393 = vmatpush.msra.mxu0 %v392
        %v394 = vand.u32 %v233, 4294901760
        %395 = vmatpush.msra.mxu0 %v394
        %v396 = vand.u32 %v232, 4294901760
        %397 = vmatpush.msra.mxu0 %v396
        %v398 = vand.u32 %v231, 4294901760
        %399 = vmatpush.msra.mxu0 %v398
        %v400 = vand.u32 %v230, 4294901760
        %401 = vmatpush.msra.mxu0 %v400
        %v402 = vand.u32 %v242, 4294901760
        %v403 = vsub.f32 %v242, %v402
        %v404 = vand.u32 %v403, 4294901760
        %405 = vmatmul.f32.gmra.mxu0 %v404
        %v406 = vpop.f32.mrf.mxu0
        %v407 = vadd.f32 %v373, %v406
        %v408 = vand.u32 %v245, 4294901760
        %v409 = vsub.f32 %v245, %v408
        %v410 = vand.u32 %v409, 4294901760
        %411 = vmatmul.f32.gmra.mxu0 %v410
        %v412 = vpop.f32.mrf.mxu0
        %v413 = vadd.f32 %v378, %v412
        %414 = vdwg.mxu0
        %415 = vmatpush.msra.mxu0 0.0
        %416 = vmatpush.msra.mxu0 0.0
        %417 = vmatpush.msra.mxu0 0.0
        %418 = vmatpush.msra.mxu0 0.0
        %419 = vmatpush.msra.mxu0 0.0
        %420 = vmatpush.msra.mxu0 0.0
        %421 = vmatpush.msra.mxu0 0.0
        %422 = vmatpush.msra.mxu0 0.0
        %423 = vmatpush.msra.mxu0 0.0
        %424 = vmatpush.msra.mxu0 0.0
        %v425 = vand.u32 %v235, 4294901760
        %v426 = vsub.f32 %v235, %v425
        %v427 = vand.u32 %v426, 4294901760
        %428 = vmatpush.msra.mxu0 %v427
        %v429 = vand.u32 %v234, 4294901760
        %v430 = vsub.f32 %v234, %v429
        %v431 = vand.u32 %v430, 4294901760
        %432 = vmatpush.msra.mxu0 %v431
        %v433 = vand.u32 %v233, 4294901760
        %v434 = vsub.f32 %v233, %v433
        %v435 = vand.u32 %v434, 4294901760
        %436 = vmatpush.msra.mxu0 %v435
        %v437 = vand.u32 %v232, 4294901760
        %v438 = vsub.f32 %v232, %v437
        %v439 = vand.u32 %v438, 4294901760
        %440 = vmatpush.msra.mxu0 %v439
        %v441 = vand.u32 %v231, 4294901760
        %v442 = vsub.f32 %v231, %v441
        %v443 = vand.u32 %v442, 4294901760
        %444 = vmatpush.msra.mxu0 %v443
        %v445 = vand.u32 %v230, 4294901760
        %v446 = vsub.f32 %v230, %v445
        %v447 = vand.u32 %v446, 4294901760
        %448 = vmatpush.msra.mxu0 %v447
        %v449 = vand.u32 %v242, 4294901760
        %450 = vmatmul.f32.gmra.mxu0 %v449
        %v451 = vpop.f32.mrf.mxu0
        %v452 = vadd.f32 %v407, %v451
        %v453 = vand.u32 %v245, 4294901760
        %454 = vmatmul.f32.gmra.mxu0 %v453
        %v455 = vpop.f32.mrf.mxu0
        %v456 = vadd.f32 %v413, %v455
        %457 = vdwg.mxu0
        %458 = vmatpush.msra.mxu0 0.0
        %459 = vmatpush.msra.mxu0 0.0
        %460 = vmatpush.msra.mxu0 0.0
        %461 = vmatpush.msra.mxu0 0.0
        %462 = vmatpush.msra.mxu0 0.0
        %463 = vmatpush.msra.mxu0 0.0
        %464 = vmatpush.msra.mxu0 0.0
        %465 = vmatpush.msra.mxu0 0.0
        %466 = vmatpush.msra.mxu0 0.0
        %467 = vmatpush.msra.mxu0 0.0
        %v468 = vand.u32 %v235, 4294901760
        %469 = vmatpush.msra.mxu0 %v468
        %v470 = vand.u32 %v234, 4294901760
        %471 = vmatpush.msra.mxu0 %v470
        %v472 = vand.u32 %v233, 4294901760
        %473 = vmatpush.msra.mxu0 %v472
        %v474 = vand.u32 %v232, 4294901760
        %475 = vmatpush.msra.mxu0 %v474
        %v476 = vand.u32 %v231, 4294901760
        %477 = vmatpush.msra.mxu0 %v476
        %v478 = vand.u32 %v230, 4294901760
        %479 = vmatpush.msra.mxu0 %v478
        %v480 = vand.u32 %v242, 4294901760
        %481 = vmatmul.f32.gmra.mxu0 %v480
        %v482 = vpop.f32.mrf.mxu0
        %v483 = vadd.f32 %v452, %v482
        %v484 = vand.u32 %v245, 4294901760
        %485 = vmatmul.f32.gmra.mxu0 %v484
        %v486 = vpop.f32.mrf.mxu0
        %v487 = vadd.f32 %v456, %v486
        %488 = vdwg.mxu0
        %489 = vst [vmem:[%s225] sm:$0xff] %v483
        %490 = vst [vmem:[%s225 + $0x8] sm:$0xff] %v487
        %s491 = sand.u32 %s113, 1
        %s492 = scalar_lea.sflag [#allocation4], %s491
        %s493 = sand.u32 %s113, 1
        %s494 = smul.addr %s493, 16
        %s495 = scalar_lea.vmem [#allocation7], %s494
        // Predicated region
        $region41: #{tpu_custom_call.1} parent=31 // pred_check
          %p496 = pneg %p123
        $region42: #{tpu_custom_call.1} parent=31 // pred_check_branch
          %498 = sbr.rel (%p496) target = $region44
        $region43: #{tpu_custom_call.1} parent=31 // pred_region
          %s499 = smul.u32 2, %s25
          %501 = vsyncadd %s492, 0
          %s502 = smul.addr %s499, 2
          %s503 = sadd.s32 %s26, %s502
          %s504 = smul.addr %s503, 8
          %s505 = scalar_lea.hbm %s3, %s504
          %s506 = sshll.u32 %s495, 4
          %s507 = int_to_ptr.vmem [resolvable:$true] %s506
          %s508 = sshll.u32 %s505, 4
          %s509 = int_to_ptr.hbm [resolvable:$true] %s508
          %514 = dma.vmem_to_hbm [thread:$0]  %s507, 256, %s509, %s492, 128, 256, 8
        $region44: #{tpu_custom_call.1} parent=31 // pred_fallthru
          _
      $region32: #{tpu_custom_call.1} parent=5 // pred_fallthru
        _
      %p515 = scmp.le.s32.totalorder 2, %s16
      // Predicated region
      $region45: #{tpu_custom_call.1} parent=5 // pred_check
        %p516 = pneg %p515
      $region46: #{tpu_custom_call.1} parent=5 // pred_check_branch
        %518 = sbr.rel (%p516) target = $region48
      $region47: #{tpu_custom_call.1} parent=5 // pred_region
        %s519 = ssub.s32 %s16, 2
        // Predicated region
        $region49: #{tpu_custom_call.1} parent=47 // pred_check
          %p520 = pneg %p129
        $region50: #{tpu_custom_call.1} parent=47 // pred_check_branch
          %522 = sbr.rel (%p520) target = $region52
        $region51: #{tpu_custom_call.1} parent=47 // pred_region
          %s523 = sand.u32 %s114, 1
          %s524 = scalar_lea.sflag [#allocation4], %s523
          %s525 = sand.u32 %s114, 1
          %s526 = smul.addr %s525, 16
          %s527 = scalar_lea.vmem [#allocation7], %s526
          %529 = dma.done %s524, 256
        $region52: #{tpu_custom_call.1} parent=47 // pred_fallthru
          _
      $region48: #{tpu_custom_call.1} parent=5 // pred_fallthru
        _
    $region6: #{tpu_custom_call.1} parent=1 // loop_footer
      %s20 = sadd.s32 1, %s16
    $region7: #{tpu_custom_call.1} parent=1 // loop_footer_branch
      %15 = sbr.rel target = $region3
    $region8: #{tpu_custom_call.1} parent=1 // loop_exit
      _
    %530 = vsyncpa [#allocation3], 1
    %s531 = scalar_lea.sflag [#allocation3], 1
    %532 = vsyncpa %s531, 1
    %533 = vsyncpa [#allocation6], 1
    %534 = vsyncpa [#allocation4], 1
    %s535 = scalar_lea.sflag [#allocation4], 1
    %536 = vsyncpa %s535, 1

</llo_original>
